<compile_context>
chip_gen: v7x
topology: tpu7x:2x2x1
jax: 0.10.0
libtpu: 0.0.40
codegen_flags: <defaults>
</compile_context>

<pallas_src>
import math
import jax
import jax.numpy as jnp
from jax.experimental import pallas as pl
from jax.experimental.pallas import tpu as pltpu


# ----------------------------------------------------------------------------- helpers
def _round_up(a, b):
    return (a + b - 1) // b * b


# ----------------------------------------------------------------------------- kernel 1: edge MLP + fused message construction (edge-parallel, runs once)
def edge_msg_kernel(ea_ref, xs_ref, wcat_ref, w4e_ref, rx_ref, msg_ref):
    f32 = jnp.float32

    ea = ea_ref[...]                                                      # [TE, ni]
    # fused first-layer matmul: [w1t | w2t | w3t]  -> one MXU pass, 6*ni wide
    cat = jnp.dot(ea, wcat_ref[...], preferred_element_type=f32)          # [TE, 6*ni]
    h = wcat_ref.shape[1] // 3                                            # = 2*ni (static)
    t1 = jnp.maximum(cat[:, :h], 0.0)
    t2 = jnp.tanh(cat[:, h:2 * h]) * jnp.tanh(cat[:, 2 * h:])

    # ea_expand[e, k*ninp + j] = relu((cat2 @ w4t)[e, k])   (replication folded
    # into w4e = w4t @ Rk in the wrapper; relu commutes with 0/1 replication)
    ea_expand = jnp.maximum(
        jnp.dot(t1, w4e_ref[:h, :], preferred_element_type=f32) +
        jnp.dot(t2, w4e_ref[h:, :], preferred_element_type=f32), 0.0)     # [TE, MSGW]

    # xs_tiled[e, k*ninp + j] = x_src[e, j]   (0/1 replication matrix -> MXU)
    xs_tiled = jnp.dot(xs_ref[...], rx_ref[...], preferred_element_type=f32)  # [TE, MSGW]

    # lane-dense message slab; bf16 store (f32 accumulation happens in kernel 2)
    msg_ref[...] = (ea_expand * xs_tiled).astype(msg_ref.dtype)


# ----------------------------------------------------------------------------- kernel 2: dst scatter reduction + SpectConv + gate epilogue
def scatter_kernel(dst_ref, msg_ref, x_ref,
                   wsp_ref, bsp_ref, wg_ref, bg_ref,
                   out_ref, acc_ref):
    f32 = jnp.float32
    bf16 = jnp.bfloat16

    n_idx = pl.program_id(0)                      # node tile ("parallel")
    e_idx = pl.program_id(1)                      # edge tile ("arbitrary", reduction, last)
    e_last = pl.num_programs(1) - 1

    @pl.when(e_idx == 0)
    def _init():
        acc_ref[...] = jnp.zeros_like(acc_ref)

    TN = acc_ref.shape[0]
    TE = msg_ref.shape[0]

    # one-hot scatter matrix built in-registers (bf16 is exact for 0/1);
    # cheap form: shift dst once, compare against a plain iota.
    local_dst = dst_ref[...] - n_idx * TN                                  # [1, TE] int32
    dt = (jax.lax.broadcasted_iota(jnp.int32, (TN, TE), 0)
          == local_dst).astype(bf16)                                       # [TN, TE]

    # single scatter matmul per step, f32 accumulation, lane-dense (MSGW=128k) acc
    acc_ref[...] += jnp.dot(dt, msg_ref[...], preferred_element_type=f32)

    @pl.when(e_idx == e_last)
    def _finalize():
        conv = jnp.maximum(
            jnp.dot(acc_ref[...], wsp_ref[...], preferred_element_type=f32)
            + bsp_ref[...], 0.0)                                           # [TN, nout1]
        x = x_ref[...]                                                     # [TN, ninp]
        g = jnp.dot(x, wg_ref[...], preferred_element_type=f32) + bg_ref[...]  # fused [.,2*nout2]
        nout2 = bg_ref.shape[1] // 2
        gate = jnp.tanh(g[:, :nout2]) * jnp.tanh(g[:, nout2:])
        pad_w = out_ref.shape[1] - conv.shape[1] - gate.shape[1]           # static
        pieces = [conv, gate]
        if pad_w:
            pieces.append(jnp.zeros((conv.shape[0], pad_w), f32))
        out_ref[...] = jnp.concatenate(pieces, axis=1)                     # lane-dense store


# ----------------------------------------------------------------------------- wrapper
def ml3_forward(x, edge_index, edge_attr, params, *, tile_n=256, tile_e=2048):
    assert tile_n % 8 == 0 and tile_e % 128 == 0
    f32 = jnp.float32
    N, ninp = x.shape
    E, nedgeinput = edge_attr.shape
    K, _, nout1 = params["wsp"].shape
    nout2 = params["w11t"].shape[1]
    out_total = nout1 + nout2
    OUT_PAD = _round_up(out_total, 128)            # lane-dense output, sliced below
    MSGW = _round_up(K * ninp, 128)                # lane-dense message / accumulator width

    # --- tile sizes respecting the (8,128) layout rule (16 on edges for bf16 packing).
    if N <= tile_n:
        TN = _round_up(N, 8); N_pad = TN
    else:
        TN = tile_n; N_pad = _round_up(N, TN)
    if E <= tile_e:
        TE = _round_up(E, 16); E_pad = TE
    else:
        TE = tile_e; E_pad = _round_up(E, TE)

    src = edge_index[0]
    dst = edge_index[1].astype(jnp.int32)
    # TODO(synk): move the x[src] row gather in-kernel (x is tiny and could stay
    # whole-array VMEM-resident with src ids in SMEM) once dynamic row-gather
    # lowering is guaranteed on all target generations.  It is now done ONCE.
    xs = jnp.take(x, src, axis=0).astype(f32)                              # [E, ninp]

    # Pad only when ragged; padded edges get zero features (=> zero message) and
    # dst = -1 (never matches a node id); padded node rows are sliced off below.
    ea = edge_attr.astype(f32)
    dst2d = dst[None, :]
    if E_pad != E:
        ea = jnp.pad(ea, ((0, E_pad - E), (0, 0)))
        xs = jnp.pad(xs, ((0, E_pad - E), (0, 0)))
        dst2d = jnp.pad(dst2d, ((0, 0), (0, E_pad - E)), constant_values=-1)
    x_p = x.astype(f32)
    if N_pad != N:
        x_p = jnp.pad(x_p, ((0, N_pad - N), (0, 0)))

    # --- wrapper-side weight fusion / padding (done once, outside the kernels).
    wcat = jnp.concatenate([params["w1t"], params["w2t"], params["w3t"]], axis=1)  # [ni, 6*ni]
    # Rk[k, k*ninp + j] = 1  -> column replication folded into w4:
    rk = jnp.repeat(jnp.eye(K, dtype=f32), ninp, axis=1)                   # [K, K*ninp]
    rk = jnp.pad(rk, ((0, 0), (0, MSGW - K * ninp)))
    w4e = params["w4t"] @ rk                                               # [4*ni, MSGW]
    # Rx[j, k*ninp + j] = 1  -> xs lane replication via one small MXU matmul:
    rx = jnp.tile(jnp.eye(ninp, dtype=f32), (1, K))                        # [ninp, K*ninp]
    rx = jnp.pad(rx, ((0, 0), (0, MSGW - K * ninp)))
    # SpectConv weight, row (k*ninp + j) = wsp[k, j, :], zero rows for lane padding.
    wsp2d = jnp.pad(params["wsp"].reshape(K * ninp, nout1),
                    ((0, MSGW - K * ninp), (0, 0)))                        # [MSGW, nout1]
    bsp = params["bsp"]                                                    # [1, nout1]
    wg = jnp.concatenate([params["w11t"], params["w12t"]], axis=1)         # [ninp, 2*nout2]
    bg = jnp.concatenate([params["b11"], params["b12"]], axis=1)           # [1, 2*nout2]

    cparams = pltpu.CompilerParams(vmem_limit_bytes=32 * 1024 * 1024)      # v7x-safe budget

    # ---------------- pass 1: edge MLP + message slab (edge work done exactly once)
    edge_weights = (wcat, w4e, rx)
    msg = pl.pallas_call(
        edge_msg_kernel,
        out_shape=jax.ShapeDtypeStruct((E_pad, MSGW), jnp.bfloat16),
        grid_spec=pltpu.PrefetchScalarGridSpec(
            num_scalar_prefetch=0,
            grid=(E_pad // TE,),
            in_specs=[
                pl.BlockSpec((TE, nedgeinput), lambda e: (e, 0)),          # edge_attr tile
                pl.BlockSpec((TE, ninp),       lambda e: (e, 0)),          # x[src] tile
                *[pl.BlockSpec(w.shape, lambda e: (0, 0)) for w in edge_weights],
            ],
            out_specs=pl.BlockSpec((TE, MSGW), lambda e: (e, 0)),
        ),
        compiler_params=pltpu.CompilerParams(
            dimension_semantics=("parallel",),
            vmem_limit_bytes=32 * 1024 * 1024),
    )(ea, xs, *edge_weights)

    # ---------------- pass 2: scatter reduction + SpectConv contraction + gate
    node_weights = (wsp2d, bsp, wg, bg)
    out_p = pl.pallas_call(
        scatter_kernel,
        out_shape=jax.ShapeDtypeStruct((N_pad, OUT_PAD), jnp.float32),
        grid_spec=pltpu.PrefetchScalarGridSpec(
            num_scalar_prefetch=0,
            grid=(N_pad // TN, E_pad // TE),
            in_specs=[
                pl.BlockSpec((1, TE),     lambda n, e: (0, e)),            # dst ids (int32)
                pl.BlockSpec((TE, MSGW),  lambda n, e: (e, 0)),            # bf16 message tile
                pl.BlockSpec((TN, ninp),  lambda n, e: (n, 0)),            # x tile (gate branch)
                *[pl.BlockSpec(w.shape, lambda n, e: (0, 0)) for w in node_weights],
            ],
            out_specs=pl.BlockSpec((TN, OUT_PAD), lambda n, e: (n, 0)),
            scratch_shapes=[pltpu.VMEM((TN, MSGW), jnp.float32)],
        ),
        compiler_params=pltpu.CompilerParams(
            dimension_semantics=("parallel", "arbitrary"),
            vmem_limit_bytes=32 * 1024 * 1024),
    )(dst2d, msg, x_p, *node_weights)

    return out_p[:N, :out_total]


# ----------------------------------------------------------------------------- reference (pure JAX, f32 — faithful to the PyTorch module)
def ml3_reference(x, edge_index, edge_attr, params):
    t1 = jax.nn.relu(edge_attr @ params["w1t"])
    t2 = jnp.tanh(edge_attr @ params["w2t"]) * jnp.tanh(edge_attr @ params["w3t"])
    ea = jax.nn.relu(jnp.concatenate([t1, t2], axis=1) @ params["w4t"])

    src, dst = edge_index[0], edge_index[1]
    conv = jnp.zeros((x.shape[0], params["wsp"].shape[2]), jnp.float32)
    for k in range(params["wsp"].shape[0]):
        msg = ea[:, k:k + 1] * x[src]
        h = jax.ops.segment_sum(msg, dst, num_segments=x.shape[0])
        conv = conv + h @ params["wsp"][k]
    conv = jax.nn.relu(conv + params["bsp"])
    gate = (jnp.tanh(x @ params["w11t"] + params["b11"]) *
            jnp.tanh(x @ params["w12t"] + params["b12"]))
    return jnp.concatenate([conv, gate], axis=1)


# ----------------------------------------------------------------------------- param init
def glorot_uniform(key, shape):
    stdv = math.sqrt(6.0 / (shape[-2] + shape[-1]))
    return jax.random.uniform(key, shape, jnp.float32, -stdv, stdv)


def init_params(key, nedgeinput, nedgeoutput, ninp, nout1, nout2):
    ks = jax.random.split(key, 9)
    # torch Linear weights are [out, in]; stored pre-transposed ([in, out]).
    w1t = glorot_uniform(ks[0], (nedgeinput, 2 * nedgeinput))
    w2t = glorot_uniform(ks[1], (nedgeinput, 2 * nedgeinput))
    w3t = glorot_uniform(ks[2], (nedgeinput, 2 * nedgeinput))
    w4t = glorot_uniform(ks[3], (4 * nedgeinput, nedgeoutput))
    # SpectConv: weight [K, ninp, nout1] (K = nedgeoutput, selfconn=False), bias zeros
    wsp = glorot_uniform(ks[4], (nedgeoutput, ninp, nout1))
    bsp = jnp.zeros((1, nout1), jnp.float32)
    # fc11 / fc12
    w11t = glorot_uniform(ks[5], (ninp, nout2))
    b11 = 0.01 * jax.random.normal(ks[6], (1, nout2), jnp.float32)
    w12t = glorot_uniform(ks[7], (ninp, nout2))
    b12 = 0.01 * jax.random.normal(ks[8], (1, nout2), jnp.float32)
    return dict(w1t=w1t, w2t=w2t, w3t=w3t, w4t=w4t,
                wsp=wsp, bsp=bsp, w11t=w11t, b11=b11, w12t=w12t, b12=b12)


# ----------------------------------------------------------------------------- main
if __name__ == "__main__":
    # Small shapes consistent with ML3Layer(learnedge=True, nedgeinput=4, nedgeoutput=4,
    #                                       ninp=8, nout1=16, nout2=8)
    N, E = 8, 16
    nedgeinput, nedgeoutput = 4, 4
    ninp, nout1, nout2 = 8, 16, 8

    key = jax.random.PRNGKey(0)
    k_x, k_e, k_src, k_dst, k_p = jax.random.split(key, 5)

    x = jax.random.normal(k_x, (N, ninp), jnp.float32)
    edge_attr = jax.random.normal(k_e, (E, nedgeinput), jnp.float32)
    src = jax.random.randint(k_src, (E,), 0, N)
    dst = jax.random.randint(k_dst, (E,), 0, N)
    edge_index = jnp.stack([src, dst], axis=0)

    params = init_params(k_p, nedgeinput, nedgeoutput, ninp, nout1, nout2)

    out = ml3_forward(x, edge_index, edge_attr, params)
    out = jax.block_until_ready(out)

    ref = ml3_reference(x, edge_index, edge_attr, params)
    assert out.shape == (N, nout1 + nout2)
    # The message slab / scatter matmul run in bf16 (f32 accumulation), so compare
    # against the f32 reference with a bf16-appropriate tolerance.
    assert jnp.allclose(out, ref, atol=5e-2, rtol=5e-2), "Pallas kernel mismatch vs JAX reference"

    print("KERNEL_OK")
</pallas_src>

<mosaic_0001>
module attributes {stable_mosaic.version = 11 : i64} {
  func.func @edge_msg_kernel(%arg0: i32, %arg1: memref<16x4xf32, #tpu.memory_space<vmem>>, %arg2: memref<16x8xf32, #tpu.memory_space<vmem>>, %arg3: memref<4x24xf32, #tpu.memory_space<vmem>>, %arg4: memref<16x128xf32, #tpu.memory_space<vmem>>, %arg5: memref<8x128xf32, #tpu.memory_space<vmem>>, %arg6: memref<16x128xbf16, #tpu.memory_space<vmem>>) attributes {dimension_semantics = [#tpu.dimension_semantics<parallel>], iteration_bounds = array<i64: 1>, scalar_prefetch = 0 : i64, scratch_operands = 0 : i64, tpu.core_type = #tpu.core_type<tc>, window_params = [{transform_indices = @transform_0, window_bounds = array<i64: 16, 4>}, {transform_indices = @transform_1, window_bounds = array<i64: 16, 8>}, {pipeline_mode = #tpu.pipeline_mode<synchronous>, transform_indices = @transform_2, window_bounds = array<i64: 4, 24>}, {pipeline_mode = #tpu.pipeline_mode<synchronous>, transform_indices = @transform_3, window_bounds = array<i64: 16, 128>}, {pipeline_mode = #tpu.pipeline_mode<synchronous>, transform_indices = @transform_4, window_bounds = array<i64: 8, 128>}, {transform_indices = @transform_5, window_bounds = array<i64: 16, 128>}]} {
    %c0 = arith.constant 0 : index
    %c0_0 = arith.constant 0 : index
    %0 = vector.load %arg1[%c0, %c0_0] : memref<16x4xf32, #tpu.memory_space<vmem>>, vector<16x4xf32>
    %c0_1 = arith.constant 0 : index
    %c0_2 = arith.constant 0 : index
    %1 = vector.load %arg3[%c0_1, %c0_2] : memref<4x24xf32, #tpu.memory_space<vmem>>, vector<4x24xf32>
    %cst = arith.constant dense<0.000000e+00> : vector<16x24xf32>
    %2 = tpu.matmul %0, %1, %cst {dimension_numbers = #tpu.dot_dimension_numbers<[1], [0], [0], [1], [0, 0, 1, 1], [], []>} : vector<16x4xf32>, vector<4x24xf32>, vector<16x24xf32> -> vector<16x24xf32>
    %3 = vector.extract_strided_slice %2 {offsets = [0, 0], sizes = [16, 8], strides = [1, 1]} : vector<16x24xf32> to vector<16x8xf32>
    %cst_3 = arith.constant 0.000000e+00 : f32
    %4 = vector.broadcast %cst_3 : f32 to vector<16x8xf32>
    %5 = arith.maximumf %3, %4 : vector<16x8xf32>
    %6 = vector.extract_strided_slice %2 {offsets = [0, 8], sizes = [16, 8], strides = [1, 1]} : vector<16x24xf32> to vector<16x8xf32>
    %7 = math.tanh %6 : vector<16x8xf32>
    %8 = vector.extract_strided_slice %2 {offsets = [0, 16], sizes = [16, 8], strides = [1, 1]} : vector<16x24xf32> to vector<16x8xf32>
    %9 = math.tanh %8 : vector<16x8xf32>
    %10 = arith.mulf %7, %9 : vector<16x8xf32>
    %c0_4 = arith.constant 0 : index
    %c0_5 = arith.constant 0 : index
    %11 = vector.load %arg4[%c0_4, %c0_5] : memref<16x128xf32, #tpu.memory_space<vmem>>, vector<8x128xf32>
    %cst_6 = arith.constant dense<0.000000e+00> : vector<16x128xf32>
    %12 = tpu.matmul %5, %11, %cst_6 {dimension_numbers = #tpu.dot_dimension_numbers<[1], [0], [0], [1], [0, 0, 1, 1], [], []>} : vector<16x8xf32>, vector<8x128xf32>, vector<16x128xf32> -> vector<16x128xf32>
    %c8 = arith.constant 8 : index
    %c0_7 = arith.constant 0 : index
    %13 = vector.load %arg4[%c8, %c0_7] : memref<16x128xf32, #tpu.memory_space<vmem>>, vector<8x128xf32>
    %cst_8 = arith.constant dense<0.000000e+00> : vector<16x128xf32>
    %14 = tpu.matmul %10, %13, %cst_8 {dimension_numbers = #tpu.dot_dimension_numbers<[1], [0], [0], [1], [0, 0, 1, 1], [], []>} : vector<16x8xf32>, vector<8x128xf32>, vector<16x128xf32> -> vector<16x128xf32>
    %15 = arith.addf %12, %14 : vector<16x128xf32>
    %cst_9 = arith.constant 0.000000e+00 : f32
    %16 = vector.broadcast %cst_9 : f32 to vector<16x128xf32>
    %17 = arith.maximumf %15, %16 : vector<16x128xf32>
    %c0_10 = arith.constant 0 : index
    %c0_11 = arith.constant 0 : index
    %18 = vector.load %arg2[%c0_10, %c0_11] : memref<16x8xf32, #tpu.memory_space<vmem>>, vector<16x8xf32>
    %c0_12 = arith.constant 0 : index
    %c0_13 = arith.constant 0 : index
    %19 = vector.load %arg5[%c0_12, %c0_13] : memref<8x128xf32, #tpu.memory_space<vmem>>, vector<8x128xf32>
    %cst_14 = arith.constant dense<0.000000e+00> : vector<16x128xf32>
    %20 = tpu.matmul %18, %19, %cst_14 {dimension_numbers = #tpu.dot_dimension_numbers<[1], [0], [0], [1], [0, 0, 1, 1], [], []>} : vector<16x8xf32>, vector<8x128xf32>, vector<16x128xf32> -> vector<16x128xf32>
    %21 = arith.mulf %17, %20 : vector<16x128xf32>
    %22 = arith.truncf %21 : vector<16x128xf32> to vector<16x128xbf16>
    %c0_15 = arith.constant 0 : index
    %c0_16 = arith.constant 0 : index
    %23 = vector.load %arg6[%c0_15, %c0_16] : memref<16x128xbf16, #tpu.memory_space<vmem>>, vector<16x128xbf16>
    tpu.vector_store %arg6[%c0_15, %c0_16], %22 {strides = array<i32>} : memref<16x128xbf16, #tpu.memory_space<vmem>>, vector<16x128xbf16>,
    return
  }
  func.func @transform_0(%arg0: i32) -> (i32, i32) {
    %c0_i32 = arith.constant 0 : i32
    %c0_i32_0 = arith.constant 0 : i32
    return %arg0, %c0_i32 : i32, i32
  }
  func.func @transform_1(%arg0: i32) -> (i32, i32) {
    %c0_i32 = arith.constant 0 : i32
    %c0_i32_0 = arith.constant 0 : i32
    return %arg0, %c0_i32 : i32, i32
  }
  func.func @transform_2(%arg0: i32) -> (i32, i32) {
    %c0_i32 = arith.constant 0 : i32
    %c0_i32_0 = arith.constant 0 : i32
    %c0_i32_1 = arith.constant 0 : i32
    return %c0_i32, %c0_i32_0 : i32, i32
  }
  func.func @transform_3(%arg0: i32) -> (i32, i32) {
    %c0_i32 = arith.constant 0 : i32
    %c0_i32_0 = arith.constant 0 : i32
    %c0_i32_1 = arith.constant 0 : i32
    return %c0_i32, %c0_i32_0 : i32, i32
  }
  func.func @transform_4(%arg0: i32) -> (i32, i32) {
    %c0_i32 = arith.constant 0 : i32
    %c0_i32_0 = arith.constant 0 : i32
    %c0_i32_1 = arith.constant 0 : i32
    return %c0_i32, %c0_i32_0 : i32, i32
  }
  func.func @transform_5(%arg0: i32) -> (i32, i32) {
    %c0_i32 = arith.constant 0 : i32
    %c0_i32_0 = arith.constant 0 : i32
    return %arg0, %c0_i32 : i32, i32
  }
}

</mosaic_0001>

<llo_original>
// kernel: tpu_custom_call.1
$region0: #{tpu_custom_call.1}
  #allocation0 [shape = 'u32[]', space=smem, size = 0x4, offset = 0x4, fixed_abs, tag = 'smem constant byte address 0x4 - core index']
  #allocation1 [shape = 'u32[144,128]{1,0:T(1,128)}', space=vmem, size = 0x12000, scoped, tag = 'internal scratch']
  %s0 = inlined_call_operand.vmem [shape: f32[16,4], index: 0, kind: input, shape index: {}]
  %s1 = inlined_call_operand.vmem [shape: f32[16,8], index: 1, kind: input, shape index: {}]
  %s2 = inlined_call_operand.vmem [shape: f32[4,24], index: 2, kind: input, shape index: {}]
  %s3 = inlined_call_operand.vmem [shape: f32[16,128], index: 3, kind: input, shape index: {}]
  %s4 = inlined_call_operand.vmem [shape: f32[8,128], index: 4, kind: input, shape index: {}]
  %s5 = inlined_call_operand.hbm [shape: bf16[16,128], index: 5, kind: output, shape index: {}]
  %s6 = sld [smem:[#allocation0]]
  $region30: #{tpu_custom_call.1} parent=0
    _
  %s8 = ssub.s32 1, %s6
  %s9 = scalar_select 0, %s8, %s6
  $region1: #{tpu_custom_call.1} parent=0
    #allocation2 [shape = 'u8[4096]{0}', space=vmem, size = 0x1000, scoped, tag = 'output window, operand 0, single buffered']
    #allocation3 [shape = 's32[1]{0}', space=sflag, size = 0x4, scoped, tag = 'scoped memory for tpu_custom_call.1']
    %10 = vsyncpa [#allocation3], 0
    // Predicated region
    $region2: #{tpu_custom_call.1} parent=1 // pred_check
      _
    $region3: #{tpu_custom_call.1} parent=1 // pred_check_branch
      %12 = sbr.rel (0) target = $region5
    $region4: #{tpu_custom_call.1} parent=1 // pred_region
      _
    $region5: #{tpu_custom_call.1} parent=1 // pred_fallthru
      _
    // Predicated region
    $region6: #{tpu_custom_call.1} parent=1 // pred_check
      _
    $region7: #{tpu_custom_call.1} parent=1 // pred_check_branch
      %14 = sbr.rel (0) target = $region9
    $region8: #{tpu_custom_call.1} parent=1 // pred_region
      _
    $region9: #{tpu_custom_call.1} parent=1 // pred_fallthru
      _
    // Predicated region
    $region10: #{tpu_custom_call.1} parent=1 // pred_check
      _
    $region11: #{tpu_custom_call.1} parent=1 // pred_check_branch
      %16 = sbr.rel (0) target = $region13
    $region12: #{tpu_custom_call.1} parent=1 // pred_region
      _
    $region13: #{tpu_custom_call.1} parent=1 // pred_fallthru
      _
    // Predicated region
    $region14: #{tpu_custom_call.1} parent=1 // pred_check
      _
    $region15: #{tpu_custom_call.1} parent=1 // pred_check_branch
      %18 = sbr.rel (0) target = $region17
    $region16: #{tpu_custom_call.1} parent=1 // pred_region
      _
    $region17: #{tpu_custom_call.1} parent=1 // pred_fallthru
      _
    // Predicated region
    $region18: #{tpu_custom_call.1} parent=1 // pred_check
      _
    $region19: #{tpu_custom_call.1} parent=1 // pred_check_branch
      %20 = sbr.rel (0) target = $region21
    $region20: #{tpu_custom_call.1} parent=1 // pred_region
      _
    $region21: #{tpu_custom_call.1} parent=1 // pred_fallthru
      _
    %v21 = vld [vmem:[%s0] sm:$0xff]
    %v22 = vld [vmem:[%s0 + $0x8] sm:$0xff]
    %v23 = vld [vmem:[%s2] sm:$0xf]
    %vm24 = vcmask 31744
    %v26 = vsel %vm24, %v21, 0
    %v29 = vsel %vm24, %v22, 0
    %vm31 = vcmask 1043456
    %v33 = vsel %vm31, %v23, 0
    %35 = vmatprep.subr.mxu0 0.0
    %36 = vmatpush1.msra.mxu0 %v33
    %37 = vmatprep.subr.mxu0 0.0
    %38 = vmatpush1.msra.mxu0 0.0
    %39 = vmatprep.subr.mxu0 0.0
    %40 = vmatpush1.msra.mxu0 0.0
    %41 = vmatprep.subr.mxu0 0.0
    %42 = vmatpush1.msra.mxu0 0.0
    %43 = vmatprep.subr.mxu0 0.0
    %44 = vmatpush1.msra.mxu0 0.0
    %45 = vmatprep.subr.mxu0 0.0
    %46 = vmatpush1.msra.mxu0 0.0
    %47 = vmatprep.subr.mxu0 0.0
    %48 = vmatpush1.msra.mxu0 0.0
    %49 = vmatprep.subr.mxu0 0.0
    %50 = vmatpush1.msra.mxu0 0.0
    %51 = vmatprep.subr.mxu0 0.0
    %52 = vmatpush1.msra.mxu0 0.0
    %53 = vmatprep.subr.mxu0 0.0
    %54 = vmatpush1.msra.mxu0 0.0
    %55 = vmatprep.subr.mxu0 0.0
    %56 = vmatpush1.msra.mxu0 0.0
    %57 = vmatprep.subr.mxu0 0.0
    %58 = vmatpush1.msra.mxu0 0.0
    %59 = vmatprep.subr.mxu0 0.0
    %60 = vmatpush1.msra.mxu0 0.0
    %61 = vmatprep.subr.mxu0 0.0
    %62 = vmatpush1.msra.mxu0 0.0
    %63 = vmatprep.subr.mxu0 0.0
    %64 = vmatpush1.msra.mxu0 0.0
    %65 = vmatprep.subr.mxu0 0.0
    %66 = vmatpush1.msra.mxu0 0.0
    %67 = vmatprep.subr.mxu0 0.0
    %68 = vmatpush1.msra.mxu0 0.0
    %69 = vmatprep.subr.mxu0 0.0
    %70 = vmatpush1.msra.mxu0 0.0
    %71 = vmatprep.subr.mxu0 0.0
    %72 = vmatpush1.msra.mxu0 0.0
    %73 = vmatprep.subr.mxu0 0.0
    %74 = vmatpush1.msra.mxu0 0.0
    %75 = vmatprep.subr.mxu0 0.0
    %76 = vmatpush1.msra.mxu0 0.0
    %77 = vmatprep.subr.mxu0 0.0
    %78 = vmatpush1.msra.mxu0 0.0
    %79 = vmatprep.subr.mxu0 0.0
    %80 = vmatpush1.msra.mxu0 0.0
    %81 = vmatprep.subr.mxu0 0.0
    %82 = vmatpush1.msra.mxu0 0.0
    %83 = vmatprep.subr.mxu0 0.0
    %84 = vmatpush1.msra.mxu0 0.0
    %85 = vmatprep.subr.mxu0 0.0
    %86 = vmatpush1.msra.mxu0 0.0
    %87 = vmatprep.subr.mxu0 0.0
    %88 = vmatpush1.msra.mxu0 0.0
    %89 = vmatprep.subr.mxu0 0.0
    %90 = vmatpush1.msra.mxu0 0.0
    %91 = vmatprep.subr.mxu0 0.0
    %92 = vmatpush1.msra.mxu0 0.0
    %93 = vmatprep.subr.mxu0 0.0
    %94 = vmatpush1.msra.mxu0 0.0
    %95 = vmatprep.subr.mxu0 0.0
    %96 = vmatpush1.msra.mxu0 0.0
    %97 = vmatprep.subr.mxu0 0.0
    %98 = vmatpush1.msra.mxu0 0.0
    %99 = vmatprep.mubr.f32.mxu0 0.0
    %100 = vmatmul.mubr.f32.gmra.mrb[0].mxu0 %v26
    %v101 = vpop.f32.mrb[0].mxu0
    %v102 = vadd.f32 0.0, %v101
    %v103 = vpop.f32.mrb[0].mxu0
    %104 = vmatprep.mubr.f32.mxu0 0.0
    %105 = vmatmul.mubr.f32.gmra.mrb[0].mxu0 %v29
    %v106 = vpop.f32.mrb[0].mxu0
    %v107 = vadd.f32 0.0, %v106
    %v108 = vpop.f32.mrb[0].mxu0
    %109 = vdwg.mxu0
    %v110 = vmax.f32 %v102, 0.0
    %v111 = vmax.f32 %v107, 0.0
    %v112 = vtanh.pop %v102
    %v113 = vtanh.pop %v107
    %116 = vrot.lane.b32.xlu0 %v112, 120
    %v117 = vpop.permute.xlu0 %116
    %118 = vrot.lane.b32.xlu0 %v113, 120
    %v119 = vpop.permute.xlu0 %118
    %v122 = vmul.f32 %v112, %v117
    %v123 = vmul.f32 %v113, %v119
    %v124 = vld [vmem:[%s3] sm:$0xff]
    %v125 = vld [vmem:[%s3 + $0x8] sm:$0xff]
    %128 = vrot.lane.b32.xlu0 %v122, 120
    %v129 = vpop.permute.xlu0 %128
    %130 = vrot.lane.b32.xlu0 %v123, 120
    %v131 = vpop.permute.xlu0 %130
    %vm132 = vcmask 64512
    %v133 = vsel %vm132, %v129, 0
    %v135 = vsel %vm132, %v131, 0
    %137 = vmatprep.subr.mxu0 0.0
    %138 = vmatpush1.msra.mxu0 %v125
    %139 = vmatprep.subr.mxu0 0.0
    %140 = vmatpush1.msra.mxu0 0.0
    %141 = vmatprep.subr.mxu0 0.0
    %142 = vmatpush1.msra.mxu0 0.0
    %143 = vmatprep.subr.mxu0 0.0
    %144 = vmatpush1.msra.mxu0 0.0
    %145 = vmatprep.subr.mxu0 0.0
    %146 = vmatpush1.msra.mxu0 0.0
    %147 = vmatprep.subr.mxu0 0.0
    %148 = vmatpush1.msra.mxu0 0.0
    %149 = vmatprep.subr.mxu0 0.0
    %150 = vmatpush1.msra.mxu0 0.0
    %151 = vmatprep.subr.mxu0 0.0
    %152 = vmatpush1.msra.mxu0 0.0
    %153 = vmatprep.subr.mxu0 0.0
    %154 = vmatpush1.msra.mxu0 0.0
    %155 = vmatprep.subr.mxu0 0.0
    %156 = vmatpush1.msra.mxu0 0.0
    %157 = vmatprep.subr.mxu0 0.0
    %158 = vmatpush1.msra.mxu0 0.0
    %159 = vmatprep.subr.mxu0 0.0
    %160 = vmatpush1.msra.mxu0 0.0
    %161 = vmatprep.subr.mxu0 0.0
    %162 = vmatpush1.msra.mxu0 0.0
    %163 = vmatprep.subr.mxu0 0.0
    %164 = vmatpush1.msra.mxu0 0.0
    %165 = vmatprep.subr.mxu0 0.0
    %166 = vmatpush1.msra.mxu0 0.0
    %167 = vmatprep.subr.mxu0 0.0
    %168 = vmatpush1.msra.mxu0 0.0
    %169 = vmatprep.subr.mxu0 0.0
    %170 = vmatpush1.msra.mxu0 0.0
    %171 = vmatprep.subr.mxu0 0.0
    %172 = vmatpush1.msra.mxu0 0.0
    %173 = vmatprep.subr.mxu0 0.0
    %174 = vmatpush1.msra.mxu0 0.0
    %175 = vmatprep.subr.mxu0 0.0
    %176 = vmatpush1.msra.mxu0 0.0
    %177 = vmatprep.subr.mxu0 0.0
    %178 = vmatpush1.msra.mxu0 0.0
    %179 = vmatprep.subr.mxu0 0.0
    %180 = vmatpush1.msra.mxu0 0.0
    %181 = vmatprep.subr.mxu0 0.0
    %182 = vmatpush1.msra.mxu0 0.0
    %183 = vmatprep.subr.mxu0 0.0
    %184 = vmatpush1.msra.mxu0 0.0
    %185 = vmatprep.subr.mxu0 0.0
    %186 = vmatpush1.msra.mxu0 0.0
    %187 = vmatprep.subr.mxu0 0.0
    %188 = vmatpush1.msra.mxu0 0.0
    %189 = vmatprep.subr.mxu0 0.0
    %190 = vmatpush1.msra.mxu0 0.0
    %191 = vmatprep.subr.mxu0 0.0
    %192 = vmatpush1.msra.mxu0 0.0
    %193 = vmatprep.subr.mxu0 0.0
    %194 = vmatpush1.msra.mxu0 0.0
    %195 = vmatprep.subr.mxu0 0.0
    %196 = vmatpush1.msra.mxu0 0.0
    %197 = vmatprep.subr.mxu0 0.0
    %198 = vmatpush1.msra.mxu0 0.0
    %199 = vmatprep.subr.mxu0 0.0
    %200 = vmatpush1.msra.mxu0 0.0
    %201 = vmatprep.mubr.f32.mxu0 0.0
    %202 = vmatmul.mubr.f32.gmra.mrb[0].mxu0 %v133
    %v203 = vpop.f32.mrb[0].mxu0
    %v204 = vadd.f32 0.0, %v203
    %v205 = vpop.f32.mrb[0].mxu0
    %206 = vmatprep.mubr.f32.mxu0 0.0
    %207 = vmatmul.mubr.f32.gmra.mrb[0].mxu0 %v135
    %v208 = vpop.f32.mrb[0].mxu0
    %v209 = vadd.f32 0.0, %v208
    %v210 = vpop.f32.mrb[0].mxu0
    %211 = vdwg.mxu0
    %v213 = vsel %vm132, %v110, 0
    %v216 = vsel %vm132, %v111, 0
    %218 = vmatprep.subr.mxu0 0.0
    %219 = vmatpush1.msra.mxu0 %v124
    %220 = vmatprep.subr.mxu0 0.0
    %221 = vmatpush1.msra.mxu0 0.0
    %222 = vmatprep.subr.mxu0 0.0
    %223 = vmatpush1.msra.mxu0 0.0
    %224 = vmatprep.subr.mxu0 0.0
    %225 = vmatpush1.msra.mxu0 0.0
    %226 = vmatprep.subr.mxu0 0.0
    %227 = vmatpush1.msra.mxu0 0.0
    %228 = vmatprep.subr.mxu0 0.0
    %229 = vmatpush1.msra.mxu0 0.0
    %230 = vmatprep.subr.mxu0 0.0
    %231 = vmatpush1.msra.mxu0 0.0
    %232 = vmatprep.subr.mxu0 0.0
    %233 = vmatpush1.msra.mxu0 0.0
    %234 = vmatprep.subr.mxu0 0.0
    %235 = vmatpush1.msra.mxu0 0.0
    %236 = vmatprep.subr.mxu0 0.0
    %237 = vmatpush1.msra.mxu0 0.0
    %238 = vmatprep.subr.mxu0 0.0
    %239 = vmatpush1.msra.mxu0 0.0
    %240 = vmatprep.subr.mxu0 0.0
    %241 = vmatpush1.msra.mxu0 0.0
    %242 = vmatprep.subr.mxu0 0.0
    %243 = vmatpush1.msra.mxu0 0.0
    %244 = vmatprep.subr.mxu0 0.0
    %245 = vmatpush1.msra.mxu0 0.0
    %246 = vmatprep.subr.mxu0 0.0
    %247 = vmatpush1.msra.mxu0 0.0
    %248 = vmatprep.subr.mxu0 0.0
    %249 = vmatpush1.msra.mxu0 0.0
    %250 = vmatprep.subr.mxu0 0.0
    %251 = vmatpush1.msra.mxu0 0.0
    %252 = vmatprep.subr.mxu0 0.0
    %253 = vmatpush1.msra.mxu0 0.0
    %254 = vmatprep.subr.mxu0 0.0
    %255 = vmatpush1.msra.mxu0 0.0
    %256 = vmatprep.subr.mxu0 0.0
    %257 = vmatpush1.msra.mxu0 0.0
    %258 = vmatprep.subr.mxu0 0.0
    %259 = vmatpush1.msra.mxu0 0.0
    %260 = vmatprep.subr.mxu0 0.0
    %261 = vmatpush1.msra.mxu0 0.0
    %262 = vmatprep.subr.mxu0 0.0
    %263 = vmatpush1.msra.mxu0 0.0
    %264 = vmatprep.subr.mxu0 0.0
    %265 = vmatpush1.msra.mxu0 0.0
    %266 = vmatprep.subr.mxu0 0.0
    %267 = vmatpush1.msra.mxu0 0.0
    %268 = vmatprep.subr.mxu0 0.0
    %269 = vmatpush1.msra.mxu0 0.0
    %270 = vmatprep.subr.mxu0 0.0
    %271 = vmatpush1.msra.mxu0 0.0
    %272 = vmatprep.subr.mxu0 0.0
    %273 = vmatpush1.msra.mxu0 0.0
    %274 = vmatprep.subr.mxu0 0.0
    %275 = vmatpush1.msra.mxu0 0.0
    %276 = vmatprep.subr.mxu0 0.0
    %277 = vmatpush1.msra.mxu0 0.0
    %278 = vmatprep.subr.mxu0 0.0
    %279 = vmatpush1.msra.mxu0 0.0
    %280 = vmatprep.subr.mxu0 0.0
    %281 = vmatpush1.msra.mxu0 0.0
    %282 = vmatprep.mubr.f32.mxu0 0.0
    %283 = vmatmul.mubr.f32.gmra.mrb[0].mxu0 %v213
    %v284 = vpop.f32.mrb[0].mxu0
    %v285 = vadd.f32 %v204, %v284
    %v286 = vpop.f32.mrb[0].mxu0
    %287 = vmatprep.mubr.f32.mxu0 0.0
    %288 = vmatmul.mubr.f32.gmra.mrb[0].mxu0 %v216
    %v289 = vpop.f32.mrb[0].mxu0
    %v290 = vadd.f32 %v209, %v289
    %v291 = vpop.f32.mrb[0].mxu0
    %292 = vdwg.mxu0
    %v293 = vmax.f32 %v285, 0.0
    %v294 = vmax.f32 %v290, 0.0
    %v295 = vld [vmem:[%s1] sm:$0xff]
    %v296 = vld [vmem:[%s1 + $0x8] sm:$0xff]
    %v297 = vld [vmem:[%s4] sm:$0xff]
    %v299 = vsel %vm132, %v295, 0
    %v302 = vsel %vm132, %v296, 0
    %304 = vmatprep.subr.mxu0 0.0
    %305 = vmatpush1.msra.mxu0 %v297
    %306 = vmatprep.subr.mxu0 0.0
    %307 = vmatpush1.msra.mxu0 0.0
    %308 = vmatprep.subr.mxu0 0.0
    %309 = vmatpush1.msra.mxu0 0.0
    %310 = vmatprep.subr.mxu0 0.0
    %311 = vmatpush1.msra.mxu0 0.0
    %312 = vmatprep.subr.mxu0 0.0
    %313 = vmatpush1.msra.mxu0 0.0
    %314 = vmatprep.subr.mxu0 0.0
    %315 = vmatpush1.msra.mxu0 0.0
    %316 = vmatprep.subr.mxu0 0.0
    %317 = vmatpush1.msra.mxu0 0.0
    %318 = vmatprep.subr.mxu0 0.0
    %319 = vmatpush1.msra.mxu0 0.0
    %320 = vmatprep.subr.mxu0 0.0
    %321 = vmatpush1.msra.mxu0 0.0
    %322 = vmatprep.subr.mxu0 0.0
    %323 = vmatpush1.msra.mxu0 0.0
    %324 = vmatprep.subr.mxu0 0.0
    %325 = vmatpush1.msra.mxu0 0.0
    %326 = vmatprep.subr.mxu0 0.0
    %327 = vmatpush1.msra.mxu0 0.0
    %328 = vmatprep.subr.mxu0 0.0
    %329 = vmatpush1.msra.mxu0 0.0
    %330 = vmatprep.subr.mxu0 0.0
    %331 = vmatpush1.msra.mxu0 0.0
    %332 = vmatprep.subr.mxu0 0.0
    %333 = vmatpush1.msra.mxu0 0.0
    %334 = vmatprep.subr.mxu0 0.0
    %335 = vmatpush1.msra.mxu0 0.0
    %336 = vmatprep.subr.mxu0 0.0
    %337 = vmatpush1.msra.mxu0 0.0
    %338 = vmatprep.subr.mxu0 0.0
    %339 = vmatpush1.msra.mxu0 0.0
    %340 = vmatprep.subr.mxu0 0.0
    %341 = vmatpush1.msra.mxu0 0.0
    %342 = vmatprep.subr.mxu0 0.0
    %343 = vmatpush1.msra.mxu0 0.0
    %344 = vmatprep.subr.mxu0 0.0
    %345 = vmatpush1.msra.mxu0 0.0
    %346 = vmatprep.subr.mxu0 0.0
    %347 = vmatpush1.msra.mxu0 0.0
    %348 = vmatprep.subr.mxu0 0.0
    %349 = vmatpush1.msra.mxu0 0.0
    %350 = vmatprep.subr.mxu0 0.0
    %351 = vmatpush1.msra.mxu0 0.0
    %352 = vmatprep.subr.mxu0 0.0
    %353 = vmatpush1.msra.mxu0 0.0
    %354 = vmatprep.subr.mxu0 0.0
    %355 = vmatpush1.msra.mxu0 0.0
    %356 = vmatprep.subr.mxu0 0.0
    %357 = vmatpush1.msra.mxu0 0.0
    %358 = vmatprep.subr.mxu0 0.0
    %359 = vmatpush1.msra.mxu0 0.0
    %360 = vmatprep.subr.mxu0 0.0
    %361 = vmatpush1.msra.mxu0 0.0
    %362 = vmatprep.subr.mxu0 0.0
    %363 = vmatpush1.msra.mxu0 0.0
    %364 = vmatprep.subr.mxu0 0.0
    %365 = vmatpush1.msra.mxu0 0.0
    %366 = vmatprep.subr.mxu0 0.0
    %367 = vmatpush1.msra.mxu0 0.0
    %368 = vmatprep.mubr.f32.mxu0 0.0
    %369 = vmatmul.mubr.f32.gmra.mrb[0].mxu0 %v299
    %v370 = vpop.f32.mrb[0].mxu0
    %v371 = vadd.f32 0.0, %v370
    %v372 = vpop.f32.mrb[0].mxu0
    %373 = vmatprep.mubr.f32.mxu0 0.0
    %374 = vmatmul.mubr.f32.gmra.mrb[0].mxu0 %v302
    %v375 = vpop.f32.mrb[0].mxu0
    %v376 = vadd.f32 0.0, %v375
    %v377 = vpop.f32.mrb[0].mxu0
    %378 = vdwg.mxu0
    %v379 = vmul.f32 %v293, %v371
    %v380 = vmul.f32 %v294, %v376
    %v381 = vpack.c.bf16 %v380, %v379
    %v383 = vunpack.c.l.b16 %v381
    %v384 = vunpack.c.h.b16 %v381
    %v385 = vpack.c.b16 %v383, %v383
    %v386 = vpack.c.b16 %v384, %v384
    %389 = vst [vmem:[#allocation2] sm:$0xf] %v385
    %390 = vst [vmem:[#allocation2 + $0x4] sm:$0xf] %v386
    // Predicated region
    $region22: #{tpu_custom_call.1} parent=1 // pred_check
      _
    $region23: #{tpu_custom_call.1} parent=1 // pred_check_branch
      %392 = sbr.rel (0) target = $region25
    $region24: #{tpu_custom_call.1} parent=1 // pred_region
      %s394 = ssub.s32 128, 128
      %395 = vsyncadd [#allocation3], %s394
      %s396 = sshll.u32 [#allocation2], 4
      %s397 = int_to_ptr.vmem [resolvable:$true] %s396
      %402 = dma.vmem_to_hbm [thread:$0]  %s397, 128, %s5, [#allocation3], 64, 64, 4
    $region25: #{tpu_custom_call.1} parent=1 // pred_fallthru
      _
    // Predicated region
    $region26: #{tpu_custom_call.1} parent=1 // pred_check
      _
    $region27: #{tpu_custom_call.1} parent=1 // pred_check_branch
      %404 = sbr.rel (0) target = $region29
    $region28: #{tpu_custom_call.1} parent=1 // pred_region
      %405 = dma.done [#allocation3], 128
    $region29: #{tpu_custom_call.1} parent=1 // pred_fallthru
      _
    %406 = vsyncpa [#allocation3], 1

</llo_original>
